<compile_context>
chip_gen: v6e
topology: v6e:2x2x1
jax: 0.10.0
libtpu: 0.0.40
codegen_flags: <defaults>
</compile_context>

<pallas_src>
import jax
import jax.numpy as jnp
from jax.experimental import pallas as pl
from jax.experimental.pallas import tpu as pltpu


def _round_up(x, m):
    return (x + m - 1) // m * m


def _patch_proj_kernel(x_ref, w_ref, b_ref, o_ref):
    # x_ref: (BM, K) bf16, w_ref: (K, Np) bf16, b_ref: (1, Np) f32,
    # o_ref: (BM, Np) out_dtype.  bf16 inputs, f32 accumulation on the MXU,
    # single cast at the store.
    acc = jnp.dot(x_ref[...], w_ref[...], preferred_element_type=jnp.float32)
    o_ref[...] = (acc + b_ref[...]).astype(o_ref.dtype)


def _vmem_estimate(bm, K, Np, out_bytes, in_bytes):
    # Conservative (lane/sublane padded, double-buffered) VMEM footprint.
    x_b = 2 * bm * _round_up(K, 128) * in_bytes
    w_b = 2 * _round_up(K, 16) * Np * in_bytes
    b_b = 2 * 8 * Np * 4
    o_b = 2 * bm * Np * out_bytes
    return x_b + w_b + b_b + o_b


def _pick_bm(M, K, Np, out_bytes, in_bytes, block_m):
    # >= ~8 pipeline steps (even count helps v7x megacore) when M allows it.
    steps = max(8, pl.cdiv(M, block_m))
    if steps % 2:
        steps += 1
    bm = min(block_m, max(16, _round_up(pl.cdiv(M, steps), 16)))  # 16: bf16 sublanes
    bm = min(bm, _round_up(M, 16))
    # Keep the footprint comfortably inside v7x's 64 MiB physical VMEM.
    budget = 48 << 20
    while bm > 16 and _vmem_estimate(bm, K, Np, out_bytes, in_bytes) > budget:
        bm = max(16, _round_up(bm // 2, 16))
    return bm


def patch_proj(x_tokens, w_mat, bias, *, block_m=512, out_dtype=jnp.bfloat16,
               x_pipeline_buffers=2):
    """x_tokens: (M, K) compute_dtype, w_mat: (K, N), bias: (N,) -> (M, N) out_dtype."""
    M, K = x_tokens.shape
    Kw, N = w_mat.shape
    assert Kw == K
    compute_dtype = x_tokens.dtype
    in_bytes = jnp.dtype(compute_dtype).itemsize
    out_bytes = jnp.dtype(out_dtype).itemsize

    # Lane-dense output width: multiple of 128; bump to a 256-multiple only when
    # the extra output bytes are negligible (v6e/v7x MXUs are 2x256x256).
    Np = _round_up(N, 128)
    if Np % 256 != 0:
        Np256 = _round_up(N, 256)
        if (Np256 - N) * 16 <= Np256:
            Np = Np256

    BM = _pick_bm(M, K, Np, out_bytes, in_bytes, block_m)
    grid_m = pl.cdiv(M, BM)          # last tile may be partial; Pallas masks it

    # Only the (tiny) weight / bias are padded along N; X stays untouched in HBM.
    w_p = w_mat if Np == N else jnp.pad(w_mat, ((0, 0), (0, Np - N)))
    b_p = bias if Np == N else jnp.pad(bias, (0, Np - N))
    w_c = w_p.astype(compute_dtype)
    b2 = b_p.astype(jnp.float32).reshape(1, Np)

    vmem_need = _vmem_estimate(BM, K, Np, out_bytes, in_bytes)
    vmem_limit = min(64 << 20, max(16 << 20, int(vmem_need * 1.5) + (4 << 20)))

    # X streams over M; deeper buffering only on request (e.g. v7x if DMA-exposed).
    if x_pipeline_buffers == 2:
        x_spec = pl.BlockSpec((BM, K), lambda i: (i, 0))
    else:
        x_spec = pl.BlockSpec((BM, K), lambda i: (i, 0),
                              pipeline_mode=pl.Buffered(x_pipeline_buffers))

    cost = pl.CostEstimate(
        flops=2 * grid_m * BM * K * Np,
        transcendentals=0,
        bytes_accessed=(M * K * in_bytes) + (K * Np * in_bytes)
                       + (M * Np * out_bytes) + (Np * 4),
    )

    y = pl.pallas_call(
        _patch_proj_kernel,
        out_shape=jax.ShapeDtypeStruct((M, Np), out_dtype),
        grid=(grid_m,),
        in_specs=[
            x_spec,                                      # X tile streams over M
            pl.BlockSpec((K, Np), lambda i: (0, 0)),     # W resident in VMEM
            pl.BlockSpec((1, Np), lambda i: (0, 0)),     # bias resident
        ],
        out_specs=pl.BlockSpec((BM, Np), lambda i: (i, 0)),
        compiler_params=pltpu.CompilerParams(
            dimension_semantics=("parallel",),   # independent rows -> megacore on v7x
            vmem_limit_bytes=vmem_limit,
        ),
        cost_estimate=cost,
    )(x_tokens, w_c, b2)

    if Np != N:
        y = y[:, :N]
    return y


def patch_embed_forward(x, weight, bias, *, compute_dtype=jnp.bfloat16,
                        out_dtype=jnp.bfloat16, block_m=512):
    """Reproduces PatchEmbed.forward.

    x:      (B, C, T, H, W) float32
    weight: (embed_dim, C, ph, pw)  (PyTorch Conv2d layout)
    bias:   (embed_dim,)
    compute_dtype / out_dtype: bf16 by default (MXU-native, halves HBM traffic);
      pass jnp.float32 for closer-to-PyTorch numerics.
    Returns (tokens, T, W_out) with tokens shape (B*T, nH*nW, embed_dim).
    """
    B, C, T, H, W = x.shape
    embed_dim, Cw, ph, pw = weight.shape
    assert Cw == C
    nH, nW = H // ph, W // pw

    # NCTHW -> token matrix.  reshape is free; transpose + reshape + cast fuse
    # into a single XLA copy (f32 read, bf16 write) since there is no pad.
    # Feature flattening order is (c, i, j), matching the Conv2d weight.
    xp = x.reshape(B, C, T, nH, ph, nW, pw)
    xp = jnp.transpose(xp, (0, 2, 3, 5, 1, 4, 6))           # (B,T,nH,nW,C,ph,pw)
    x_tokens = xp.reshape(B * T * nH * nW, C * ph * pw).astype(compute_dtype)

    # Conv weight (embed_dim, C, ph, pw) -> (K, N), same (c, i, j) K order.
    w_mat = weight.reshape(embed_dim, C * ph * pw).T

    y = patch_proj(x_tokens, w_mat, bias, block_m=block_m, out_dtype=out_dtype)
    y = y.reshape(B * T, nH * nW, embed_dim)                 # == flatten(2).transpose(1,2)
    return y, T, nW


if __name__ == "__main__":
    # Small, module-consistent shapes.
    B, C, T, H, W = 2, 3, 2, 16, 16
    patch_size = 4
    embed_dim = 32

    key = jax.random.PRNGKey(0)
    kx, kw, kb = jax.random.split(key, 3)
    x = jax.random.normal(kx, (B, C, T, H, W), dtype=jnp.float32)
    weight = jax.random.normal(kw, (embed_dim, C, patch_size, patch_size),
                               dtype=jnp.float32) * 0.02
    bias = jax.random.normal(kb, (embed_dim,), dtype=jnp.float32) * 0.02

    fwd = jax.jit(lambda x_, w_, b_: patch_embed_forward(x_, w_, b_))
    tokens, t_out, w_out = fwd(x, weight, bias)
    tokens = jax.block_until_ready(tokens)

    # Sanity check against a plain-JAX (f32) conv reference.
    x_bt = jnp.transpose(x, (0, 2, 1, 3, 4)).reshape(B * T, C, H, W)
    ref = jax.lax.conv_general_dilated(
        x_bt, weight, window_strides=(patch_size, patch_size),
        padding="VALID", dimension_numbers=("NCHW", "OIHW", "NCHW"),
    ) + bias.reshape(1, embed_dim, 1, 1)
    ref = ref.reshape(B * T, embed_dim, -1).transpose(0, 2, 1)

    assert tokens.shape == ref.shape
    # bf16 compute/output vs f32 reference: loosened tolerance (documented tradeoff).
    assert jnp.allclose(tokens.astype(jnp.float32), ref, atol=2e-2, rtol=2e-2)
    assert int(t_out) == T and int(w_out) == W // patch_size

    print("KERNEL_OK")
</pallas_src>

<mosaic_0001>
module attributes {stable_mosaic.version = 11 : i64} {
  func.func @_patch_proj_kernel(%arg0: i32, %arg1: memref<16x48xbf16, #tpu.memory_space<vmem>>, %arg2: memref<48x128xbf16, #tpu.memory_space<vmem>>, %arg3: memref<1x128xf32, #tpu.memory_space<vmem>>, %arg4: memref<16x128xbf16, #tpu.memory_space<vmem>>) attributes {dimension_semantics = [#tpu.dimension_semantics<parallel>], iteration_bounds = array<i64: 4>, scalar_prefetch = 0 : i64, scratch_operands = 0 : i64, tpu.core_type = #tpu.core_type<tc>, window_params = [{transform_indices = @transform_0, window_bounds = array<i64: 16, 48>}, {pipeline_mode = #tpu.pipeline_mode<synchronous>, transform_indices = @transform_1, window_bounds = array<i64: 48, 128>}, {pipeline_mode = #tpu.pipeline_mode<synchronous>, transform_indices = @transform_2, window_bounds = array<i64: 1, 128>}, {transform_indices = @transform_3, window_bounds = array<i64: 16, 128>}]} {
    %c0 = arith.constant 0 : index
    %c0_0 = arith.constant 0 : index
    %0 = vector.load %arg1[%c0, %c0_0] : memref<16x48xbf16, #tpu.memory_space<vmem>>, vector<16x48xbf16>
    %c0_1 = arith.constant 0 : index
    %c0_2 = arith.constant 0 : index
    %1 = vector.load %arg2[%c0_1, %c0_2] : memref<48x128xbf16, #tpu.memory_space<vmem>>, vector<48x128xbf16>
    %cst = arith.constant dense<0.000000e+00> : vector<16x128xf32>
    %2 = tpu.matmul %0, %1, %cst {dimension_numbers = #tpu.dot_dimension_numbers<[1], [0], [0], [1], [0, 0, 1, 1], [], []>} : vector<16x48xbf16>, vector<48x128xbf16>, vector<16x128xf32> -> vector<16x128xf32>
    %c0_3 = arith.constant 0 : index
    %c0_4 = arith.constant 0 : index
    %3 = vector.load %arg3[%c0_3, %c0_4] : memref<1x128xf32, #tpu.memory_space<vmem>>, vector<1x128xf32>
    %4 = vector.broadcast %3 : vector<1x128xf32> to vector<16x128xf32>
    %5 = arith.addf %2, %4 : vector<16x128xf32>
    %6 = arith.truncf %5 : vector<16x128xf32> to vector<16x128xbf16>
    %c0_5 = arith.constant 0 : index
    %c0_6 = arith.constant 0 : index
    %7 = vector.load %arg4[%c0_5, %c0_6] : memref<16x128xbf16, #tpu.memory_space<vmem>>, vector<16x128xbf16>
    tpu.vector_store %arg4[%c0_5, %c0_6], %6 {strides = array<i32>} : memref<16x128xbf16, #tpu.memory_space<vmem>>, vector<16x128xbf16>,
    return
  }
  func.func @transform_0(%arg0: i32) -> (i32, i32) {
    %c0_i32 = arith.constant 0 : i32
    %c0_i32_0 = arith.constant 0 : i32
    return %arg0, %c0_i32 : i32, i32
  }
  func.func @transform_1(%arg0: i32) -> (i32, i32) {
    %c0_i32 = arith.constant 0 : i32
    %c0_i32_0 = arith.constant 0 : i32
    %c0_i32_1 = arith.constant 0 : i32
    return %c0_i32, %c0_i32_0 : i32, i32
  }
  func.func @transform_2(%arg0: i32) -> (i32, i32) {
    %c0_i32 = arith.constant 0 : i32
    %c0_i32_0 = arith.constant 0 : i32
    %c0_i32_1 = arith.constant 0 : i32
    return %c0_i32, %c0_i32_0 : i32, i32
  }
  func.func @transform_3(%arg0: i32) -> (i32, i32) {
    %c0_i32 = arith.constant 0 : i32
    %c0_i32_0 = arith.constant 0 : i32
    return %arg0, %c0_i32 : i32, i32
  }
}

</mosaic_0001>

<llo_original>
// kernel: _lambda_.1
$region0: #{_lambda_.1}
  #allocation0 [shape = 'u32[]', space=smem, size = 0x4, offset = 0x4, fixed_abs, tag = 'smem constant byte address 0x4 - core index']
  #allocation1 [shape = 'u32[144,128]{1,0:T(1,128)}', space=vmem, size = 0x12000, scoped, tag = 'internal scratch']
  %s0 = inlined_call_operand.vmem [shape: bf16[64,48], index: 0, kind: input, shape index: {}]
  %s1 = inlined_call_operand.vmem [shape: bf16[48,128], index: 1, kind: input, shape index: {}]
  %s2 = inlined_call_operand.vmem [shape: f32[1,128], index: 2, kind: input, shape index: {}]
  %s3 = inlined_call_operand.hbm [shape: bf16[64,128], index: 3, kind: output, shape index: {}]
  %s4 = sld [smem:[#allocation0]]
  $region45: #{_lambda_.1} parent=0
    _
  %s6 = ssub.s32 1, %s4
  %s7 = scalar_select 0, %s6, %s4
  $region1: #{_lambda_.1} parent=0
    #allocation2 [shape = 'u8[8192]{0}', space=vmem, size = 0x2000, scoped, tag = 'output window, operand 0']
    #allocation3 [shape = 's32[2]{0}', space=sflag, size = 0x8, scoped, tag = 'scoped memory for _lambda_.1']
    %8 = vsyncpa [#allocation3], 0
    %s9 = scalar_lea.sflag [#allocation3], 1
    %10 = vsyncpa %s9, 0
    loop: start=0, step=1, limit=6
    $region2: #{_lambda_.1} parent=1 // loop_pre_header
      _
    $region3: #{_lambda_.1} parent=1 // loop_header
      %s12 = sphi 0, %s16
      %p13 = scmp.ge.s32.totalorder %s12, 6
      %s22 = sphi 0, %s24
      %s25 = sphi 0, %s22
      %s26 = sphi 0, %s25
      %s42 = sphi 0, %s26
      %s46 = sphi 0, %s46
      %s48 = sphi 0, %s46
      %s49 = sphi 0, %s48
      %s63 = sphi 0, %s49
      %s67 = sphi 0, %s67
      %s69 = sphi 0, %s67
      %s70 = sphi 0, %s69
      %s84 = sphi 0, %s70
      %s90 = sphi 0, %s92
      %s93 = sphi 0, %s90
      %s94 = sphi 0, %s93
      %s110 = sphi 0, %s94
    $region4: #{_lambda_.1} parent=1 // loop_header_branch
      %15 = sbr.rel (%p13) target = $region8
    $region5: #{_lambda_.1} parent=1 // loop_body
      %s17 = ssub.s32 %s12, 1
      %s18 = ssub.s32 %s12, 2
      %s19 = sadd.s32 %s12, 1
      %s20 = ssub.s32 %s12, %s19
      %p21 = scmp.eq.s32.totalorder %s20, 0
      %s23 = sadd.s32 %s22, 1
      %s24 = scalar_select %p21, %s22, %s23
      %p27 = pneg %p21
      %p28 = scmp.eq.s32.totalorder %s12, 3
      %p29 = por %p27, %p28
      %p30 = scmp.ne.s32.totalorder %s22, %s25
      %p31 = scmp.eq.s32.totalorder %s12, 0
      %p32 = por %p30, %p31
      %p33 = scmp.ne.s32.totalorder %s22, %s25
      %p34 = scmp.eq.s32.totalorder %s17, 3
      %p35 = por %p33, %p34
      %p36 = scmp.ne.s32.totalorder %s25, %s26
      %p37 = scmp.eq.s32.totalorder %s17, 0
      %p38 = por %p36, %p37
      %p39 = scmp.ne.s32.totalorder %s25, %s26
      %p40 = scmp.eq.s32.totalorder %s18, 3
      %p41 = por %p39, %p40
      %p43 = scmp.ne.s32.totalorder %s26, %s42
      %p44 = scmp.eq.s32.totalorder %s18, 0
      %p45 = por %p43, %p44
      %s47 = sadd.s32 %s46, 1
      %p50 = scmp.eq.s32.totalorder %s12, 3
      %p51 = scmp.ne.s32.totalorder %s46, %s48
      %p52 = scmp.eq.s32.totalorder %s12, 0
      %p53 = por %p51, %p52
      %p54 = scmp.ne.s32.totalorder %s46, %s48
      %p55 = scmp.eq.s32.totalorder %s17, 3
      %p56 = por %p54, %p55
      %p57 = scmp.ne.s32.totalorder %s48, %s49
      %p58 = scmp.eq.s32.totalorder %s17, 0
      %p59 = por %p57, %p58
      %p60 = scmp.ne.s32.totalorder %s48, %s49
      %p61 = scmp.eq.s32.totalorder %s18, 3
      %p62 = por %p60, %p61
      %p64 = scmp.ne.s32.totalorder %s49, %s63
      %p65 = scmp.eq.s32.totalorder %s18, 0
      %p66 = por %p64, %p65
      %s68 = sadd.s32 %s67, 1
      %p71 = scmp.eq.s32.totalorder %s12, 3
      %p72 = scmp.ne.s32.totalorder %s67, %s69
      %p73 = scmp.eq.s32.totalorder %s12, 0
      %p74 = por %p72, %p73
      %p75 = scmp.ne.s32.totalorder %s67, %s69
      %p76 = scmp.eq.s32.totalorder %s17, 3
      %p77 = por %p75, %p76
      %p78 = scmp.ne.s32.totalorder %s69, %s70
      %p79 = scmp.eq.s32.totalorder %s17, 0
      %p80 = por %p78, %p79
      %p81 = scmp.ne.s32.totalorder %s69, %s70
      %p82 = scmp.eq.s32.totalorder %s18, 3
      %p83 = por %p81, %p82
      %p85 = scmp.ne.s32.totalorder %s70, %s84
      %p86 = scmp.eq.s32.totalorder %s18, 0
      %p87 = por %p85, %p86
      %s88 = ssub.s32 %s12, %s19
      %p89 = scmp.eq.s32.totalorder %s88, 0
      %s91 = sadd.s32 %s90, 1
      %s92 = scalar_select %p89, %s90, %s91
      %p95 = pneg %p89
      %p96 = scmp.eq.s32.totalorder %s12, 3
      %p97 = por %p95, %p96
      %p98 = scmp.ne.s32.totalorder %s90, %s93
      %p99 = scmp.eq.s32.totalorder %s12, 0
      %p100 = por %p98, %p99
      %p101 = scmp.ne.s32.totalorder %s90, %s93
      %p102 = scmp.eq.s32.totalorder %s17, 3
      %p103 = por %p101, %p102
      %p104 = scmp.ne.s32.totalorder %s93, %s94
      %p105 = scmp.eq.s32.totalorder %s17, 0
      %p106 = por %p104, %p105
      %p107 = scmp.ne.s32.totalorder %s93, %s94
      %p108 = scmp.eq.s32.totalorder %s18, 3
      %p109 = por %p107, %p108
      %p111 = scmp.ne.s32.totalorder %s94, %s110
      %p112 = scmp.eq.s32.totalorder %s18, 0
      %p113 = por %p111, %p112
      %p114 = scmp.le.s32.totalorder 1, %s12
      %p115 = scmp.lt.s32.totalorder %s12, 5
      %p116 = pnand %p114, %p115
      %p117 = pneg %p116
      // Predicated region
      $region9: #{_lambda_.1} parent=5 // pred_check
        _
      $region10: #{_lambda_.1} parent=5 // pred_check_branch
        %119 = sbr.rel (%p116) target = $region12
      $region11: #{_lambda_.1} parent=5 // pred_region
        %s120 = ssub.s32 %s12, 1
        // Predicated region
        $region13: #{_lambda_.1} parent=11 // pred_check
          %p121 = pneg %p59
        $region14: #{_lambda_.1} parent=11 // pred_check_branch
          %123 = sbr.rel (%p121) target = $region16
        $region15: #{_lambda_.1} parent=11 // pred_region
          _
        $region16: #{_lambda_.1} parent=11 // pred_fallthru
          _
        // Predicated region
        $region17: #{_lambda_.1} parent=11 // pred_check
          %p124 = pneg %p80
        $region18: #{_lambda_.1} parent=11 // pred_check_branch
          %126 = sbr.rel (%p124) target = $region20
        $region19: #{_lambda_.1} parent=11 // pred_region
          _
        $region20: #{_lambda_.1} parent=11 // pred_fallthru
          _
      $region12: #{_lambda_.1} parent=5 // pred_fallthru
        _
      %p127 = scmp.lt.s32.totalorder %s12, 4
      // Predicated region
      $region21: #{_lambda_.1} parent=5 // pred_check
        %p128 = pneg %p127
      $region22: #{_lambda_.1} parent=5 // pred_check_branch
        %130 = sbr.rel (%p128) target = $region24
      $region23: #{_lambda_.1} parent=5 // pred_region
        // Predicated region
        $region25: #{_lambda_.1} parent=23 // pred_check
          %p131 = pneg %p32
        $region26: #{_lambda_.1} parent=23 // pred_check_branch
          %133 = sbr.rel (%p131) target = $region28
        $region27: #{_lambda_.1} parent=23 // pred_region
          %s134 = smul.u32 2, %s12
          %p135 = scmp.lt.s32.totalorder %s134, 7
          %s136 = scalar_select %p135, %s134, 7
          %s137 = smul.addr %s136, 4
          %s138 = scalar_lea.vmem %s0, %s137
          %s139 = smul.u32 2, %s12
        $region28: #{_lambda_.1} parent=23 // pred_fallthru
          _
      $region24: #{_lambda_.1} parent=5 // pred_fallthru
        _
      %p140 = scmp.le.s32.totalorder 1, %s12
      %p141 = scmp.lt.s32.totalorder %s12, 5
      %p142 = pnand %p140, %p141
      %p143 = pneg %p142
      // Predicated region
      $region29: #{_lambda_.1} parent=5 // pred_check
        _
      $region30: #{_lambda_.1} parent=5 // pred_check_branch
        %145 = sbr.rel (%p142) target = $region32
      $region31: #{_lambda_.1} parent=5 // pred_region
        %s146 = ssub.s32 %s12, 1
        %s147 = smul.u32 2, %s17
        %p148 = scmp.lt.s32.totalorder %s147, 7
        %s149 = scalar_select %p148, %s147, 7
        %s150 = smul.addr %s149, 4
        %s151 = scalar_lea.vmem %s0, %s150
        %p152 = pneg %p38
        %p153 = pneg %p35
        %p154 = pneg %p59
        %p155 = pneg %p56
        %p156 = pneg %p80
        %p157 = pneg %p77
        %p158 = pneg %p106
        %p159 = pneg %p103
        %s160 = sand.u32 %s93, 1
        %s161 = scalar_lea.sflag [#allocation3], %s160
        %s162 = sand.u32 %s93, 1
        %s163 = smul.addr %s162, 8
        %s164 = scalar_lea.vmem [#allocation2], %s163
        %s165 = smul.u32 2, %s17
        %p166 = scmp.lt.s32.totalorder %s165, 7
        %s167 = scalar_select %p166, %s165, 7
        %s168 = smul.addr %s167, 4
        %s169 = scalar_lea.vmem %s0, %s168
        %s170 = smul.u32 2, %s17
        %s171 = smul.u32 2, %s17
        %v173 = vld [vmem:[%s169] sm:$0xf]
        %v174 = vld [vmem:[%s169 + $0x4] sm:$0xf]
        %v175 = vld [vmem:[%s1] sm:$0xf]
        %v176 = vld [vmem:[%s1 + $0x4] sm:$0xf]
        %v177 = vld [vmem:[%s1 + $0x8] sm:$0xf]
        %v178 = vld [vmem:[%s1 + $0xc] sm:$0xf]
        %v179 = vld [vmem:[%s1 + $0x10] sm:$0xf]
        %v180 = vld [vmem:[%s1 + $0x14] sm:$0xf]
        %v181 = vld [vmem:[%s2] sm:$0x1]
        %v183 = vlaneseq
        %v184 = vshrl.u32 %v183, 7
        %v185 = vsub.s32 0, %v184
        %v186 = vrot.slane %v181, %v185
        %v190 = vunpack.c.l.b16 %v173
        %v191 = vunpack.c.l.b16 %v174
        %v192 = vpack.c.b16 %v191, %v190
        %v199 = vunpack.c.l.b16 %v175
        %v200 = vunpack.c.l.b16 %v176
        %v201 = vunpack.c.l.b16 %v177
        %v202 = vunpack.c.l.b16 %v178
        %v203 = vunpack.c.l.b16 %v179
        %v204 = vunpack.c.l.b16 %v180
        %v205 = vpack.c.b16 %v200, %v199
        %v206 = vpack.c.b16 %v202, %v201
        %v207 = vpack.c.b16 %v204, %v203
        %vm211 = vcmask 392192
        %v213 = vsel %vm211, %v192, 0
        %215 = vmatprep.subr.bf16.mxu0 0
        %216 = vmatpush1.bf16.msra.mxu0 0
        %217 = vmatprep.subr.bf16.mxu0 0
        %218 = vmatpush1.bf16.msra.mxu0 0
        %219 = vmatprep.subr.bf16.mxu0 0
        %220 = vmatpush1.bf16.msra.mxu0 0
        %221 = vmatprep.subr.bf16.mxu0 0
        %222 = vmatpush1.bf16.msra.mxu0 0
        %223 = vmatprep.subr.bf16.mxu0 0
        %224 = vmatpush1.bf16.msra.mxu0 0
        %225 = vmatprep.subr.bf16.mxu0 0
        %226 = vmatpush1.bf16.msra.mxu0 %v207
        %227 = vmatprep.subr.bf16.mxu0 0
        %228 = vmatpush1.bf16.msra.mxu0 %v206
        %229 = vmatprep.subr.bf16.mxu0 0
        %230 = vmatpush1.bf16.msra.mxu0 %v205
        %231 = vmatprep.subr.bf16.mxu0 0
        %232 = vmatpush2.bf16.msra.mxu0 0
        %233 = vmatprep.subr.bf16.mxu0 0
        %234 = vmatpush2.bf16.msra.mxu0 0
        %235 = vmatprep.subr.bf16.mxu0 0
        %236 = vmatpush2.bf16.msra.mxu0 0
        %237 = vmatprep.subr.bf16.mxu0 0
        %238 = vmatpush2.bf16.msra.mxu0 0
        %239 = vmatprep.subr.bf16.mxu0 0
        %240 = vmatpush2.bf16.msra.mxu0 0
        %241 = vmatprep.subr.bf16.mxu0 0
        %242 = vmatpush2.bf16.msra.mxu0 0
        %243 = vmatprep.subr.bf16.mxu0 0
        %244 = vmatpush2.bf16.msra.mxu0 0
        %245 = vmatprep.subr.bf16.mxu0 0
        %246 = vmatpush2.bf16.msra.mxu0 0
        %247 = vmatprep.mubr.bf16.mxu0 0
        %248 = vmatmul.mubr.bf16.gmra.mxu0 %v213
        %v249 = vpop.f32.mrf.mxu0
        %v250 = vadd.f32 %v186, %v249
        %v251 = vpop.f32.mrf.mxu0
        %v252 = vpop.f32.mrf.mxu0
        %v253 = vadd.f32 %v186, %v252
        %v254 = vpop.f32.mrf.mxu0
        %255 = vdwg.mxu0
        %v256 = vpack.c.bf16 %v253, %v250
        %v258 = vunpack.c.l.b16 %v256
        %v259 = vunpack.c.h.b16 %v256
        %v260 = vpack.c.b16 %v258, %v258
        %v261 = vpack.c.b16 %v259, %v259
        %264 = vst [vmem:[%s164] sm:$0xf] %v260
        %265 = vst [vmem:[%s164 + $0x4] sm:$0xf] %v261
        %s266 = sand.u32 %s93, 1
        %s267 = scalar_lea.sflag [#allocation3], %s266
        %s268 = sand.u32 %s93, 1
        %s269 = smul.addr %s268, 8
        %s270 = scalar_lea.vmem [#allocation2], %s269
        // Predicated region
        $region33: #{_lambda_.1} parent=31 // pred_check
          %p271 = pneg %p103
        $region34: #{_lambda_.1} parent=31 // pred_check_branch
          %273 = sbr.rel (%p271) target = $region36
        $region35: #{_lambda_.1} parent=31 // pred_region
          %s274 = smul.u32 2, %s17
          %s276 = ssub.s32 128, 128
          %277 = vsyncadd %s267, %s276
          %s278 = smul.addr %s274, 64
          %s279 = scalar_lea.hbm %s3, %s278
          %s280 = sshll.u32 %s270, 4
          %s281 = int_to_ptr.vmem [resolvable:$true] %s280
          %286 = dma.vmem_to_hbm [thread:$0]  %s281, 128, %s279, %s267, 64, 64, 4
        $region36: #{_lambda_.1} parent=31 // pred_fallthru
          _
      $region32: #{_lambda_.1} parent=5 // pred_fallthru
        _
      %p287 = scmp.le.s32.totalorder 2, %s12
      // Predicated region
      $region37: #{_lambda_.1} parent=5 // pred_check
        %p288 = pneg %p287
      $region38: #{_lambda_.1} parent=5 // pred_check_branch
        %290 = sbr.rel (%p288) target = $region40
      $region39: #{_lambda_.1} parent=5 // pred_region
        %s291 = ssub.s32 %s12, 2
        // Predicated region
        $region41: #{_lambda_.1} parent=39 // pred_check
          %p292 = pneg %p109
        $region42: #{_lambda_.1} parent=39 // pred_check_branch
          %294 = sbr.rel (%p292) target = $region44
        $region43: #{_lambda_.1} parent=39 // pred_region
          %s295 = sand.u32 %s94, 1
          %s296 = scalar_lea.sflag [#allocation3], %s295
          %s297 = sand.u32 %s94, 1
          %s298 = smul.addr %s297, 8
          %s299 = scalar_lea.vmem [#allocation2], %s298
          %300 = dma.done %s296, 128
        $region44: #{_lambda_.1} parent=39 // pred_fallthru
          _
      $region40: #{_lambda_.1} parent=5 // pred_fallthru
        _
    $region6: #{_lambda_.1} parent=1 // loop_footer
      %s16 = sadd.s32 1, %s12
    $region7: #{_lambda_.1} parent=1 // loop_footer_branch
      %11 = sbr.rel target = $region3
    $region8: #{_lambda_.1} parent=1 // loop_exit
      _
    %301 = vsyncpa [#allocation3], 1
    %s302 = scalar_lea.sflag [#allocation3], 1
    %303 = vsyncpa %s302, 1

</llo_original>
